<compile_context>
chip_gen: v7x
topology: tpu7x:2x2x1
jax: 0.10.0
libtpu: 0.0.40
codegen_flags: <defaults>
</compile_context>

<pallas_src>
import jax
import jax.numpy as jnp
from jax.experimental import pallas as pl
from jax.experimental.pallas import tpu as pltpu


# ----------------------------- Pallas kernel ---------------------------------
def _sgconv_kernel(a_ref, x_ref, w_ref, b_ref, o_ref):
    # Propagate first (contraction over rows, output width T=32 << Hp): t = A_blk @ X_tile.
    t = jnp.dot(a_ref[...], x_ref[...], preferred_element_type=jnp.float32)
    # Project: o = t @ W_pad + b  -> (rows, Hp), lane-dense unmasked stores.
    o = jnp.dot(t.astype(jnp.bfloat16), w_ref[...], preferred_element_type=jnp.float32)
    o_ref[...] = o + b_ref[...]


def sgconv_pallas(a_tile, x_rows, w_pad, b_pad):
    """a_tile : (R, R)  bf16  single block-diagonal tile of kron(I, A_hat^2) (shared by
                               every grid step -> constant index_map, VMEM-resident)
       x_rows : (B*N, T) bf16  batch folded into rows
       w_pad  : (T, Hp) bf16   zero-padded projection weights (Hp multiple of 128)
       b_pad  : (1, Hp) f32    zero-padded bias
       returns (B*N, Hp) f32."""
    BN, T = x_rows.shape
    R = a_tile.shape[0]
    Hp = w_pad.shape[1]
    assert BN % R == 0
    grid = (BN // R,)

    flops = 2 * (BN * R * T + BN * T * Hp)
    bytes_accessed = (
        a_tile.size * 2 + x_rows.size * 2 + w_pad.size * 2 + b_pad.size * 4
        + BN * Hp * 4
    )

    return pl.pallas_call(
        _sgconv_kernel,
        out_shape=jax.ShapeDtypeStruct((BN, Hp), jnp.float32),
        grid=grid,
        in_specs=[
            pl.BlockSpec((R, R), lambda i: (0, 0)),    # resident diagonal block of A
            pl.BlockSpec((R, T), lambda i: (i, 0)),    # row tile of X
            pl.BlockSpec((T, Hp), lambda i: (0, 0)),   # shared weights (resident)
            pl.BlockSpec((1, Hp), lambda i: (0, 0)),   # shared bias (resident)
        ],
        out_specs=pl.BlockSpec((R, Hp), lambda i: (i, 0)),
        compiler_params=pltpu.CompilerParams(
            dimension_semantics=("parallel",),
            allow_input_fusion=[True, True, True, True],
        ),
        cost_estimate=pl.CostEstimate(
            flops=flops, transcendentals=0, bytes_accessed=bytes_accessed
        ),
    )(a_tile, x_rows, w_pad, b_pad)


# ------------------------------ JAX glue --------------------------------------
def gcn_norm_dense(edge_index, edge_weight, num_nodes):
    """torch_geometric gcn_norm (add_self_loops=True, fill_value=1.0), materialized dense
    via scatter-free one-hot matmuls (MXU-friendly, fully fusible):
      out[c, r] = sum_e norm[e] * [col[e]==c][row[e]==r]."""
    row, col = edge_index[0], edge_index[1]
    loop = jnp.arange(num_nodes, dtype=row.dtype)
    row = jnp.concatenate([row, loop])
    col = jnp.concatenate([col, loop])
    ew = jnp.concatenate(
        [edge_weight.astype(jnp.float32), jnp.ones((num_nodes,), jnp.float32)]
    )
    oh_row = jax.nn.one_hot(row, num_nodes, dtype=jnp.float32)   # (E', N)
    oh_col = jax.nn.one_hot(col, num_nodes, dtype=jnp.float32)   # (E', N)
    deg = oh_col.T @ ew                                          # (N,)
    deg_inv_sqrt = jnp.where(deg > 0.0, jax.lax.rsqrt(deg), 0.0)
    norm = (oh_row @ deg_inv_sqrt) * ew * (oh_col @ deg_inv_sqrt)  # (E',)
    a_hat = oh_col.T @ (norm[:, None] * oh_row)                  # (N, N), A_hat[col,row]=norm
    return a_hat


def _round_up(v, m):
    return ((v + m - 1) // m) * m


def _pick_row_tile(bn, n_nodes, cap=512):
    """Largest multiple of n_nodes that divides bn and is <= cap (single step if it fits)."""
    if bn <= cap:
        return bn
    t = (cap // n_nodes) * n_nodes
    while t >= n_nodes:
        if bn % t == 0 and t % 8 == 0:
            return t
        t -= n_nodes
    return bn


def simple_gcn_net_forward(x, edge_index, edge_weights, w, b):
    """x: (B, N, T) batch of B graphs sharing topology + learnable edge weights."""
    B, N, T = x.shape
    H = w.shape[1]

    a_hat = gcn_norm_dense(edge_index, edge_weights, N)
    a2 = a_hat @ a_hat                                   # collapse K=2 propagation

    # Row tile (covers whole samples); a single block-diagonal A tile is shared by all steps.
    BN = B * N
    row_tile = _pick_row_tile(BN, N)
    a_tile = jnp.kron(jnp.eye(row_tile // N, dtype=jnp.float32), a2)  # (row_tile, row_tile)

    Hp = _round_up(H, 128)                               # lane-dense output stores
    w_pad = jnp.pad(w, ((0, 0), (0, Hp - H)))
    b_pad = jnp.pad(b, (0, Hp - H)).reshape(1, Hp)
    x_rows = x.reshape(BN, T)                            # batch folded into rows

    out_pad = sgconv_pallas(
        a_tile.astype(jnp.bfloat16),                     # bf16 MXU operands,
        x_rows.astype(jnp.bfloat16),                     # f32 accumulation
        w_pad.astype(jnp.bfloat16),
        b_pad.astype(jnp.float32),
    )
    return out_pad.reshape(B, N, Hp)[:, :, :H]


def _reference(x, edge_index, edge_weights, w, b):
    a_hat = gcn_norm_dense(edge_index, edge_weights, x.shape[1])
    h = jnp.einsum("ij,bjt->bit", a_hat, x)
    h = jnp.einsum("ij,bjt->bit", a_hat, h)
    return h @ w + b[None, None, :]


# ------------------------------ main -------------------------------------------
if __name__ == "__main__":
    key = jax.random.PRNGKey(0)
    k_x, k_ew, k_w, k_b = jax.random.split(key, 4)

    B = 16            # batch of EEG windows sharing the graph / edge weights
    N = 16            # graph nodes (channels)
    T = 32            # time_steps = SGConv in_channels
    H = 64            # num_hiddens = SGConv out_channels

    # Node features: (B, N, T)
    x = jax.random.normal(k_x, (B, N, T), dtype=jnp.float32)

    # Deterministic edge_index: ring graph (both directions) -> (2, E)
    src = jnp.concatenate([jnp.arange(N), (jnp.arange(N) + 1) % N]).astype(jnp.int32)
    dst = jnp.concatenate([(jnp.arange(N) + 1) % N, jnp.arange(N)]).astype(jnp.int32)
    edge_index = jnp.stack([src, dst], axis=0)
    E = edge_index.shape[1]

    # Learnable edge weights (nn.Parameter in torch) - positive deterministic init.
    edge_weights = jax.random.uniform(
        k_ew, (E,), dtype=jnp.float32, minval=0.1, maxval=1.0
    )

    # SGConv linear parameters: W (T, H) (torch weight transposed), b (H,)
    w = jax.random.normal(k_w, (T, H), dtype=jnp.float32) * (1.0 / jnp.sqrt(T))
    b = jax.random.normal(k_b, (H,), dtype=jnp.float32) * 0.01

    fwd = jax.jit(simple_gcn_net_forward)   # fuse A_hat / A^2 / pads / casts with the launch
    out = jax.block_until_ready(fwd(x, edge_index, edge_weights, w, b))
    ref = _reference(x, edge_index, edge_weights, w, b)

    assert out.shape == (B, N, H)
    # bf16 MXU operands with f32 accumulation -> tolerance relaxed vs. pure-f32 path.
    assert jnp.allclose(out, ref, atol=5e-2, rtol=5e-2), float(
        jnp.max(jnp.abs(out - ref))
    )
    print("KERNEL_OK")
</pallas_src>

<mosaic_0001>
module attributes {stable_mosaic.version = 11 : i64} {
  func.func @_sgconv_kernel(%arg0: i32, %arg1: memref<256x256xbf16, #tpu.memory_space<vmem>>, %arg2: memref<256x32xbf16, #tpu.memory_space<vmem>>, %arg3: memref<32x128xbf16, #tpu.memory_space<vmem>>, %arg4: memref<1x128xf32, #tpu.memory_space<vmem>>, %arg5: memref<256x128xf32, #tpu.memory_space<vmem>>) attributes {dimension_semantics = [#tpu.dimension_semantics<parallel>], iteration_bounds = array<i64: 1>, scalar_prefetch = 0 : i64, scratch_operands = 0 : i64, tpu.core_type = #tpu.core_type<tc>, window_params = [{pipeline_mode = #tpu.pipeline_mode<synchronous>, transform_indices = @transform_0, window_bounds = array<i64: 256, 256>}, {transform_indices = @transform_1, window_bounds = array<i64: 256, 32>}, {pipeline_mode = #tpu.pipeline_mode<synchronous>, transform_indices = @transform_2, window_bounds = array<i64: 32, 128>}, {pipeline_mode = #tpu.pipeline_mode<synchronous>, transform_indices = @transform_3, window_bounds = array<i64: 1, 128>}, {transform_indices = @transform_4, window_bounds = array<i64: 256, 128>}]} {
    %c0 = arith.constant 0 : index
    %c0_0 = arith.constant 0 : index
    %0 = vector.load %arg1[%c0, %c0_0] : memref<256x256xbf16, #tpu.memory_space<vmem>>, vector<256x256xbf16>
    %c0_1 = arith.constant 0 : index
    %c0_2 = arith.constant 0 : index
    %1 = vector.load %arg2[%c0_1, %c0_2] : memref<256x32xbf16, #tpu.memory_space<vmem>>, vector<256x32xbf16>
    %cst = arith.constant dense<0.000000e+00> : vector<256x32xf32>
    %2 = tpu.matmul %0, %1, %cst {dimension_numbers = #tpu.dot_dimension_numbers<[1], [0], [0], [1], [0, 0, 1, 1], [], []>} : vector<256x256xbf16>, vector<256x32xbf16>, vector<256x32xf32> -> vector<256x32xf32>
    %3 = arith.truncf %2 : vector<256x32xf32> to vector<256x32xbf16>
    %c0_3 = arith.constant 0 : index
    %c0_4 = arith.constant 0 : index
    %4 = vector.load %arg3[%c0_3, %c0_4] : memref<32x128xbf16, #tpu.memory_space<vmem>>, vector<32x128xbf16>
    %cst_5 = arith.constant dense<0.000000e+00> : vector<256x128xf32>
    %5 = tpu.matmul %3, %4, %cst_5 {dimension_numbers = #tpu.dot_dimension_numbers<[1], [0], [0], [1], [0, 0, 1, 1], [], []>} : vector<256x32xbf16>, vector<32x128xbf16>, vector<256x128xf32> -> vector<256x128xf32>
    %c0_6 = arith.constant 0 : index
    %c0_7 = arith.constant 0 : index
    %6 = vector.load %arg4[%c0_6, %c0_7] : memref<1x128xf32, #tpu.memory_space<vmem>>, vector<1x128xf32>
    %7 = vector.broadcast %6 : vector<1x128xf32> to vector<256x128xf32>
    %8 = arith.addf %5, %7 : vector<256x128xf32>
    %c0_8 = arith.constant 0 : index
    %c0_9 = arith.constant 0 : index
    %9 = vector.load %arg5[%c0_8, %c0_9] : memref<256x128xf32, #tpu.memory_space<vmem>>, vector<256x128xf32>
    tpu.vector_store %arg5[%c0_8, %c0_9], %8 {strides = array<i32>} : memref<256x128xf32, #tpu.memory_space<vmem>>, vector<256x128xf32>,
    return
  }
  func.func @transform_0(%arg0: i32) -> (i32, i32) {
    %c0_i32 = arith.constant 0 : i32
    %c0_i32_0 = arith.constant 0 : i32
    %c0_i32_1 = arith.constant 0 : i32
    return %c0_i32, %c0_i32_0 : i32, i32
  }
  func.func @transform_1(%arg0: i32) -> (i32, i32) {
    %c0_i32 = arith.constant 0 : i32
    %c0_i32_0 = arith.constant 0 : i32
    return %arg0, %c0_i32 : i32, i32
  }
  func.func @transform_2(%arg0: i32) -> (i32, i32) {
    %c0_i32 = arith.constant 0 : i32
    %c0_i32_0 = arith.constant 0 : i32
    %c0_i32_1 = arith.constant 0 : i32
    return %c0_i32, %c0_i32_0 : i32, i32
  }
  func.func @transform_3(%arg0: i32) -> (i32, i32) {
    %c0_i32 = arith.constant 0 : i32
    %c0_i32_0 = arith.constant 0 : i32
    %c0_i32_1 = arith.constant 0 : i32
    return %c0_i32, %c0_i32_0 : i32, i32
  }
  func.func @transform_4(%arg0: i32) -> (i32, i32) {
    %c0_i32 = arith.constant 0 : i32
    %c0_i32_0 = arith.constant 0 : i32
    return %arg0, %c0_i32 : i32, i32
  }
}

</mosaic_0001>

<llo_original>
// kernel: simple_gcn_net_forward.2
$region0: #{simple_gcn_net_forward.2}
  #allocation0 [shape = 'u32[]', space=smem, size = 0x4, offset = 0x4, fixed_abs, tag = 'smem constant byte address 0x4 - core index']
  #allocation1 [shape = 'u32[144,128]{1,0:T(1,128)}', space=vmem, size = 0x12000, scoped, tag = 'internal scratch']
  #allocation2 [shape = 'u32[2048]{0}', space=vmem, size = 0x2000, scoped, tag = 'scoped memory for simple_gcn_net_forward.2']
  #allocation3 [shape = 'u32[2048]{0}', space=vmem, size = 0x2000, scoped, tag = 'scoped memory for simple_gcn_net_forward.2']
  #allocation4 [shape = 'u32[2048]{0}', space=vmem, size = 0x2000, scoped, tag = 'scoped memory for simple_gcn_net_forward.2']
  #allocation5 [shape = 'u32[2048]{0}', space=vmem, size = 0x2000, scoped, tag = 'scoped memory for simple_gcn_net_forward.2']
  #allocation6 [shape = 'u32[2048]{0}', space=vmem, size = 0x2000, scoped, tag = 'scoped memory for simple_gcn_net_forward.2']
  #allocation7 [shape = 'u32[2048]{0}', space=vmem, size = 0x2000, scoped, tag = 'scoped memory for simple_gcn_net_forward.2']
  #allocation8 [shape = 'u32[2048]{0}', space=vmem, size = 0x2000, scoped, tag = 'scoped memory for simple_gcn_net_forward.2']
  #allocation9 [shape = 'u32[2048]{0}', space=vmem, size = 0x2000, scoped, tag = 'scoped memory for simple_gcn_net_forward.2']
  #allocation10 [shape = 'u32[2048]{0}', space=vmem, size = 0x2000, scoped, tag = 'scoped memory for simple_gcn_net_forward.2']
  #allocation11 [shape = 'u32[2048]{0}', space=vmem, size = 0x2000, scoped, tag = 'scoped memory for simple_gcn_net_forward.2']
  %s0 = inlined_call_operand.vmem [shape: bf16[256,256], index: 0, kind: input, shape index: {}]
  %s1 = inlined_call_operand.vmem [shape: bf16[256,32], index: 1, kind: input, shape index: {}]
  %s2 = inlined_call_operand.vmem [shape: bf16[32,64], index: 2, kind: input, shape index: {}]
  %s3 = inlined_call_operand.<no memory space> [shape: bf16[], index: 3, kind: input, shape index: {}]
  %s4 = inlined_call_operand.vmem [shape: f32[64], index: 4, kind: input, shape index: {}]
  %s5 = inlined_call_operand.<no memory space> [shape: f32[], index: 5, kind: input, shape index: {}]
  %s6 = inlined_call_operand.hbm [shape: f32[256,128], index: 6, kind: output, shape index: {}]
  %s7 = sld [smem:[#allocation0]]
  $region26: #{simple_gcn_net_forward.2} parent=0
    _
  %s9 = ssub.s32 1, %s7
  %s10 = scalar_select 0, %s9, %s7
  %v11 = vstv %s3
  %v12 = vunpack.i.l.bf16 %v11
  %v14 = vunpack.i.h.bf16 %v11
  %v16 = vstv %s5
  $region1: #{simple_gcn_net_forward.2} parent=0
    #allocation12 [shape = 'u8[131072]{0}', space=vmem, size = 0x20000, scoped, tag = 'output window, operand 0, single buffered']
    #allocation13 [shape = 's32[1]{0}', space=sflag, size = 0x4, scoped, tag = 'scoped memory for simple_gcn_net_forward.2']
    #allocation14 [shape = 'u8[8192]{0}', space=vmem, size = 0x2000, dematerialized = true, scoped, tag = 'FusionAdapter Buffer %fusion.11 = bf16[32,128]{1,0:T(8,128)(2,1)} fusion(%param_2.43, %param_3.22), kind=kLoop, calls=%fused_computation.11.clone, metadata={op_name="jit(simple_gcn_net_forward)/jit(_pad)/pad" stack_frame_id=29}']
    #allocation15 [shape = 'u8[512]{0}', space=vmem, size = 0x400, dematerialized = true, scoped, tag = 'FusionAdapter Buffer %fusion.21 = f32[1,128]{1,0:T(1,128)} fusion(%param_4.5, %param_5), kind=kLoop, calls=%fused_computation.23.clone, metadata={op_name="jit(simple_gcn_net_forward)/reshape" stack_frame_id=31}']
    %17 = vsyncpa [#allocation13], 0
    // Predicated region
    $region2: #{simple_gcn_net_forward.2} parent=1 // pred_check
      _
    $region3: #{simple_gcn_net_forward.2} parent=1 // pred_check_branch
      %19 = sbr.rel (0) target = $region5
    $region4: #{simple_gcn_net_forward.2} parent=1 // pred_region
      _
    $region5: #{simple_gcn_net_forward.2} parent=1 // pred_fallthru
      _
    // Predicated region
    $region6: #{simple_gcn_net_forward.2} parent=1 // pred_check
      _
    $region7: #{simple_gcn_net_forward.2} parent=1 // pred_check_branch
      %21 = sbr.rel (0) target = $region9
    $region8: #{simple_gcn_net_forward.2} parent=1 // pred_region
      _
    $region9: #{simple_gcn_net_forward.2} parent=1 // pred_fallthru
      _
    // Predicated region
    $region10: #{simple_gcn_net_forward.2} parent=1 // pred_check
      _
    $region11: #{simple_gcn_net_forward.2} parent=1 // pred_check_branch
      %23 = sbr.rel (0) target = $region13
    $region12: #{simple_gcn_net_forward.2} parent=1 // pred_region
      _
    $region13: #{simple_gcn_net_forward.2} parent=1 // pred_fallthru
      _
    // Predicated region
    $region14: #{simple_gcn_net_forward.2} parent=1 // pred_check
      _
    $region15: #{simple_gcn_net_forward.2} parent=1 // pred_check_branch
      %25 = sbr.rel (0) target = $region17
    $region16: #{simple_gcn_net_forward.2} parent=1 // pred_region
      _
    $region17: #{simple_gcn_net_forward.2} parent=1 // pred_fallthru
      _
    %s27 = sor.u32 255, 127
    %s28 = sand.u32 %s27, 85
    %s29 = sshrl.u32 %s28, 1
    %s30 = sor.u32 %s28, %s29
    %s31 = sand.u32 51, %s30
    %s32 = sshrl.u32 %s31, 2
    %s33 = sor.u32 %s31, %s32
    %s34 = sand.u32 15, %s33
    %v35 = vld [vmem:[%s2] sm:%s34]
    %v36 = vunpack.c.l.bf16 %v35
    %v37 = vunpack.c.h.bf16 %v35
    %v38 = vlaneseq
    %v39 = vand.u32 %v38, 127
    %vm41 = vcmp.lt.s32.totalorder %v39, 64
    %v42 = vsel %vm41, %v36, %v12
    %v43 = vpack.c.bf16 0.0, %v42
    %45 = vst [vmem:[#allocation14] sm:$0xf] %v43
    %s46 = scalar_lea.vmem %s2, 4
    %s48 = sor.u32 255, 127
    %s49 = sand.u32 %s48, 85
    %s50 = sshrl.u32 %s49, 1
    %s51 = sor.u32 %s49, %s50
    %s52 = sand.u32 51, %s51
    %s53 = sshrl.u32 %s52, 2
    %s54 = sor.u32 %s52, %s53
    %s55 = sand.u32 15, %s54
    %v56 = vld [vmem:[%s46] sm:%s55]
    %v57 = vunpack.c.l.bf16 %v56
    %v58 = vunpack.c.h.bf16 %v56
    %v59 = vlaneseq
    %v60 = vand.u32 %v59, 127
    %vm62 = vcmp.lt.s32.totalorder %v60, 64
    %v63 = vsel %vm62, %v57, %v12
    %s64 = scalar_lea.vmem [#allocation14], 4
    %v65 = vpack.c.bf16 0.0, %v63
    %67 = vst [vmem:[%s64] sm:$0xf] %v65
    %s68 = scalar_lea.vmem %s2, 8
    %s70 = sor.u32 255, 127
    %s71 = sand.u32 %s70, 85
    %s72 = sshrl.u32 %s71, 1
    %s73 = sor.u32 %s71, %s72
    %s74 = sand.u32 51, %s73
    %s75 = sshrl.u32 %s74, 2
    %s76 = sor.u32 %s74, %s75
    %s77 = sand.u32 15, %s76
    %v78 = vld [vmem:[%s68] sm:%s77]
    %v79 = vunpack.c.l.bf16 %v78
    %v80 = vunpack.c.h.bf16 %v78
    %v81 = vlaneseq
    %v82 = vand.u32 %v81, 127
    %vm84 = vcmp.lt.s32.totalorder %v82, 64
    %v85 = vsel %vm84, %v79, %v12
    %s86 = scalar_lea.vmem [#allocation14], 8
    %v87 = vpack.c.bf16 0.0, %v85
    %89 = vst [vmem:[%s86] sm:$0xf] %v87
    %s90 = scalar_lea.vmem %s2, 12
    %s92 = sor.u32 255, 127
    %s93 = sand.u32 %s92, 85
    %s94 = sshrl.u32 %s93, 1
    %s95 = sor.u32 %s93, %s94
    %s96 = sand.u32 51, %s95
    %s97 = sshrl.u32 %s96, 2
    %s98 = sor.u32 %s96, %s97
    %s99 = sand.u32 15, %s98
    %v100 = vld [vmem:[%s90] sm:%s99]
    %v101 = vunpack.c.l.bf16 %v100
    %v102 = vunpack.c.h.bf16 %v100
    %v103 = vlaneseq
    %v104 = vand.u32 %v103, 127
    %vm106 = vcmp.lt.s32.totalorder %v104, 64
    %v107 = vsel %vm106, %v101, %v12
    %s108 = scalar_lea.vmem [#allocation14], 12
    %v109 = vpack.c.bf16 0.0, %v107
    %111 = vst [vmem:[%s108] sm:$0xf] %v109
    %v112 = vld [vmem:[%s4] sm:$0x1]
    %v113 = vlaneseq
    %vm115 = vcmp.lt.s32.totalorder %v113, 64
    %v116 = vsel %vm115, %v112, %v16
    %118 = vst [vmem:[#allocation15] sm:$0x1] %v116
    %v120 = vld [vmem:[%s0] sm:$0xff]
    %v121 = vld [vmem:[%s0 + $0x8] sm:$0xff]
    %v122 = vld [vmem:[%s0 + $0x10] sm:$0xff]
    %v123 = vld [vmem:[%s0 + $0x18] sm:$0xff]
    %v124 = vld [vmem:[%s0 + $0x20] sm:$0xff]
    %v125 = vld [vmem:[%s0 + $0x28] sm:$0xff]
    %v126 = vld [vmem:[%s0 + $0x30] sm:$0xff]
    %v127 = vld [vmem:[%s0 + $0x38] sm:$0xff]
    %v128 = vld [vmem:[%s0 + $0x40] sm:$0xff]
    %v129 = vld [vmem:[%s0 + $0x48] sm:$0xff]
    %v130 = vld [vmem:[%s0 + $0x50] sm:$0xff]
    %v131 = vld [vmem:[%s0 + $0x58] sm:$0xff]
    %v132 = vld [vmem:[%s0 + $0x60] sm:$0xff]
    %v133 = vld [vmem:[%s0 + $0x68] sm:$0xff]
    %v134 = vld [vmem:[%s0 + $0x70] sm:$0xff]
    %v135 = vld [vmem:[%s0 + $0x78] sm:$0xff]
    %v136 = vld [vmem:[%s0 + $0x80] sm:$0xff]
    %v137 = vld [vmem:[%s0 + $0x88] sm:$0xff]
    %v138 = vld [vmem:[%s0 + $0x90] sm:$0xff]
    %v139 = vld [vmem:[%s0 + $0x98] sm:$0xff]
    %v140 = vld [vmem:[%s0 + $0xa0] sm:$0xff]
    %v141 = vld [vmem:[%s0 + $0xa8] sm:$0xff]
    %v142 = vld [vmem:[%s0 + $0xb0] sm:$0xff]
    %v143 = vld [vmem:[%s0 + $0xb8] sm:$0xff]
    %v144 = vld [vmem:[%s0 + $0xc0] sm:$0xff]
    %v145 = vld [vmem:[%s0 + $0xc8] sm:$0xff]
    %v146 = vld [vmem:[%s0 + $0xd0] sm:$0xff]
    %v147 = vld [vmem:[%s0 + $0xd8] sm:$0xff]
    %v148 = vld [vmem:[%s0 + $0xe0] sm:$0xff]
    %v149 = vld [vmem:[%s0 + $0xe8] sm:$0xff]
    %v150 = vld [vmem:[%s0 + $0xf0] sm:$0xff]
    %v151 = vld [vmem:[%s0 + $0xf8] sm:$0xff]
    %v152 = vld [vmem:[%s1] sm:$0xf]
    %v153 = vld [vmem:[%s1 + $0x4] sm:$0xf]
    %v154 = vld [vmem:[%s1 + $0x8] sm:$0xf]
    %v155 = vld [vmem:[%s1 + $0xc] sm:$0xf]
    %v156 = vld [vmem:[%s1 + $0x10] sm:$0xf]
    %v157 = vld [vmem:[%s1 + $0x14] sm:$0xf]
    %v158 = vld [vmem:[%s1 + $0x18] sm:$0xf]
    %v159 = vld [vmem:[%s1 + $0x1c] sm:$0xf]
    %v160 = vld [vmem:[%s1 + $0x20] sm:$0xf]
    %v161 = vld [vmem:[%s1 + $0x24] sm:$0xf]
    %v162 = vld [vmem:[%s1 + $0x28] sm:$0xf]
    %v163 = vld [vmem:[%s1 + $0x2c] sm:$0xf]
    %v164 = vld [vmem:[%s1 + $0x30] sm:$0xf]
    %v165 = vld [vmem:[%s1 + $0x34] sm:$0xf]
    %v166 = vld [vmem:[%s1 + $0x38] sm:$0xf]
    %v167 = vld [vmem:[%s1 + $0x3c] sm:$0xf]
    %v168 = vld [vmem:[%s1 + $0x40] sm:$0xf]
    %v169 = vld [vmem:[%s1 + $0x44] sm:$0xf]
    %v170 = vld [vmem:[%s1 + $0x48] sm:$0xf]
    %v171 = vld [vmem:[%s1 + $0x4c] sm:$0xf]
    %v172 = vld [vmem:[%s1 + $0x50] sm:$0xf]
    %v173 = vld [vmem:[%s1 + $0x54] sm:$0xf]
    %v174 = vld [vmem:[%s1 + $0x58] sm:$0xf]
    %v175 = vld [vmem:[%s1 + $0x5c] sm:$0xf]
    %v176 = vld [vmem:[%s1 + $0x60] sm:$0xf]
    %v177 = vld [vmem:[%s1 + $0x64] sm:$0xf]
    %v178 = vld [vmem:[%s1 + $0x68] sm:$0xf]
    %v179 = vld [vmem:[%s1 + $0x6c] sm:$0xf]
    %v180 = vld [vmem:[%s1 + $0x70] sm:$0xf]
    %v181 = vld [vmem:[%s1 + $0x74] sm:$0xf]
    %v182 = vld [vmem:[%s1 + $0x78] sm:$0xf]
    %v183 = vld [vmem:[%s1 + $0x7c] sm:$0xf]
    %v216 = vunpack.c.l.b16 %v120
    %v217 = vunpack.c.h.b16 %v120
    %v218 = vunpack.c.l.b16 %v121
    %v219 = vunpack.c.h.b16 %v121
    %v220 = vunpack.c.l.b16 %v122
    %v221 = vunpack.c.h.b16 %v122
    %v222 = vunpack.c.l.b16 %v123
    %v223 = vunpack.c.h.b16 %v123
    %v224 = vunpack.c.l.b16 %v124
    %v225 = vunpack.c.h.b16 %v124
    %v226 = vunpack.c.l.b16 %v125
    %v227 = vunpack.c.h.b16 %v125
    %v228 = vunpack.c.l.b16 %v126
    %v229 = vunpack.c.h.b16 %v126
    %v230 = vunpack.c.l.b16 %v127
    %v231 = vunpack.c.h.b16 %v127
    %v232 = vunpack.c.l.b16 %v128
    %v233 = vunpack.c.h.b16 %v128
    %v234 = vunpack.c.l.b16 %v129
    %v235 = vunpack.c.h.b16 %v129
    %v236 = vunpack.c.l.b16 %v130
    %v237 = vunpack.c.h.b16 %v130
    %v238 = vunpack.c.l.b16 %v131
    %v239 = vunpack.c.h.b16 %v131
    %v240 = vunpack.c.l.b16 %v132
    %v241 = vunpack.c.h.b16 %v132
    %v242 = vunpack.c.l.b16 %v133
    %v243 = vunpack.c.h.b16 %v133
    %v244 = vunpack.c.l.b16 %v134
    %v245 = vunpack.c.h.b16 %v134
    %v246 = vunpack.c.l.b16 %v135
    %v247 = vunpack.c.h.b16 %v135
    %v248 = vunpack.c.l.b16 %v136
    %v249 = vunpack.c.h.b16 %v136
    %v250 = vunpack.c.l.b16 %v137
    %v251 = vunpack.c.h.b16 %v137
    %v252 = vunpack.c.l.b16 %v138
    %v253 = vunpack.c.h.b16 %v138
    %v254 = vunpack.c.l.b16 %v139
    %v255 = vunpack.c.h.b16 %v139
    %v256 = vunpack.c.l.b16 %v140
    %v257 = vunpack.c.h.b16 %v140
    %v258 = vunpack.c.l.b16 %v141
    %v259 = vunpack.c.h.b16 %v141
    %v260 = vunpack.c.l.b16 %v142
    %v261 = vunpack.c.h.b16 %v142
    %v262 = vunpack.c.l.b16 %v143
    %v263 = vunpack.c.h.b16 %v143
    %v264 = vunpack.c.l.b16 %v144
    %v265 = vunpack.c.h.b16 %v144
    %v266 = vunpack.c.l.b16 %v145
    %v267 = vunpack.c.h.b16 %v145
    %v268 = vunpack.c.l.b16 %v146
    %v269 = vunpack.c.h.b16 %v146
    %v270 = vunpack.c.l.b16 %v147
    %v271 = vunpack.c.h.b16 %v147
    %v272 = vunpack.c.l.b16 %v148
    %v273 = vunpack.c.h.b16 %v148
    %v274 = vunpack.c.l.b16 %v149
    %v275 = vunpack.c.h.b16 %v149
    %v276 = vunpack.c.l.b16 %v150
    %v277 = vunpack.c.h.b16 %v150
    %v278 = vunpack.c.l.b16 %v151
    %v279 = vunpack.c.h.b16 %v151
    %v280 = vpack.c.b16 %v218, %v216
    %v281 = vpack.c.b16 %v219, %v217
    %v282 = vpack.c.b16 %v222, %v220
    %v283 = vpack.c.b16 %v223, %v221
    %v284 = vpack.c.b16 %v226, %v224
    %v285 = vpack.c.b16 %v227, %v225
    %v286 = vpack.c.b16 %v230, %v228
    %v287 = vpack.c.b16 %v231, %v229
    %v288 = vpack.c.b16 %v234, %v232
    %v289 = vpack.c.b16 %v235, %v233
    %v290 = vpack.c.b16 %v238, %v236
    %v291 = vpack.c.b16 %v239, %v237
    %v292 = vpack.c.b16 %v242, %v240
    %v293 = vpack.c.b16 %v243, %v241
    %v294 = vpack.c.b16 %v246, %v244
    %v295 = vpack.c.b16 %v247, %v245
    %v296 = vpack.c.b16 %v250, %v248
    %v297 = vpack.c.b16 %v251, %v249
    %v298 = vpack.c.b16 %v254, %v252
    %v299 = vpack.c.b16 %v255, %v253
    %v300 = vpack.c.b16 %v258, %v256
    %v301 = vpack.c.b16 %v259, %v257
    %v302 = vpack.c.b16 %v262, %v260
    %v303 = vpack.c.b16 %v263, %v261
    %v304 = vpack.c.b16 %v266, %v264
    %v305 = vpack.c.b16 %v267, %v265
    %v306 = vpack.c.b16 %v270, %v268
    %v307 = vpack.c.b16 %v271, %v269
    %v308 = vpack.c.b16 %v274, %v272
    %v309 = vpack.c.b16 %v275, %v273
    %v310 = vpack.c.b16 %v278, %v276
    %v311 = vpack.c.b16 %v279, %v277
    %v376 = vunpack.c.l.b16 %v152
    %v377 = vunpack.c.l.b16 %v153
    %v378 = vunpack.c.l.b16 %v154
    %v379 = vunpack.c.l.b16 %v155
    %v380 = vunpack.c.l.b16 %v156
    %v381 = vunpack.c.l.b16 %v157
    %v382 = vunpack.c.l.b16 %v158
    %v383 = vunpack.c.l.b16 %v159
    %v384 = vunpack.c.l.b16 %v160
    %v385 = vunpack.c.l.b16 %v161
    %v386 = vunpack.c.l.b16 %v162
    %v387 = vunpack.c.l.b16 %v163
    %v388 = vunpack.c.l.b16 %v164
    %v389 = vunpack.c.l.b16 %v165
    %v390 = vunpack.c.l.b16 %v166
    %v391 = vunpack.c.l.b16 %v167
    %v392 = vunpack.c.l.b16 %v168
    %v393 = vunpack.c.l.b16 %v169
    %v394 = vunpack.c.l.b16 %v170
    %v395 = vunpack.c.l.b16 %v171
    %v396 = vunpack.c.l.b16 %v172
    %v397 = vunpack.c.l.b16 %v173
    %v398 = vunpack.c.l.b16 %v174
    %v399 = vunpack.c.l.b16 %v175
    %v400 = vunpack.c.l.b16 %v176
    %v401 = vunpack.c.l.b16 %v177
    %v402 = vunpack.c.l.b16 %v178
    %v403 = vunpack.c.l.b16 %v179
    %v404 = vunpack.c.l.b16 %v180
    %v405 = vunpack.c.l.b16 %v181
    %v406 = vunpack.c.l.b16 %v182
    %v407 = vunpack.c.l.b16 %v183
    %v408 = vpack.c.b16 %v377, %v376
    %v409 = vpack.c.b16 %v379, %v378
    %v410 = vpack.c.b16 %v381, %v380
    %v411 = vpack.c.b16 %v383, %v382
    %v412 = vpack.c.b16 %v385, %v384
    %v413 = vpack.c.b16 %v387, %v386
    %v414 = vpack.c.b16 %v389, %v388
    %v415 = vpack.c.b16 %v391, %v390
    %v416 = vpack.c.b16 %v393, %v392
    %v417 = vpack.c.b16 %v395, %v394
    %v418 = vpack.c.b16 %v397, %v396
    %v419 = vpack.c.b16 %v399, %v398
    %v420 = vpack.c.b16 %v401, %v400
    %v421 = vpack.c.b16 %v403, %v402
    %v422 = vpack.c.b16 %v405, %v404
    %v423 = vpack.c.b16 %v407, %v406
    %440 = vmatprep.subr.bf16.mxu0 0
    %441 = vmatpush1.bf16.msra.mxu0 %v408
    %442 = vmatprep.subr.bf16.mxu0 0
    %443 = vmatpush1.bf16.msra.mxu0 %v409
    %444 = vmatprep.subr.bf16.mxu0 0
    %445 = vmatpush1.bf16.msra.mxu0 %v410
    %446 = vmatprep.subr.bf16.mxu0 0
    %447 = vmatpush1.bf16.msra.mxu0 %v411
    %448 = vmatprep.subr.bf16.mxu0 0
    %449 = vmatpush1.bf16.msra.mxu0 %v412
    %450 = vmatprep.subr.bf16.mxu0 0
    %451 = vmatpush1.bf16.msra.mxu0 %v413
    %452 = vmatprep.subr.bf16.mxu0 0
    %453 = vmatpush1.bf16.msra.mxu0 %v414
    %454 = vmatprep.subr.bf16.mxu0 0
    %455 = vmatpush1.bf16.msra.mxu0 %v415
    %456 = vmatprep.subr.bf16.mxu0 0
    %457 = vmatpush1.bf16.msra.mxu0 %v416
    %458 = vmatprep.subr.bf16.mxu0 0
    %459 = vmatpush1.bf16.msra.mxu0 %v417
    %460 = vmatprep.subr.bf16.mxu0 0
    %461 = vmatpush1.bf16.msra.mxu0 %v418
    %462 = vmatprep.subr.bf16.mxu0 0
    %463 = vmatpush1.bf16.msra.mxu0 %v419
    %464 = vmatprep.subr.bf16.mxu0 0
    %465 = vmatpush1.bf16.msra.mxu0 %v420
    %466 = vmatprep.subr.bf16.mxu0 0
    %467 = vmatpush1.bf16.msra.mxu0 %v421
    %468 = vmatprep.subr.bf16.mxu0 0
    %469 = vmatpush1.bf16.msra.mxu0 %v422
    %470 = vmatprep.subr.bf16.mxu0 0
    %471 = vmatpush1.bf16.msra.mxu0 %v423
    %472 = vmatprep.mubr.bf16.mxu0 %v281
    %473 = vmatmul.mubr.bf16.gmra.mrb[0].mxu0 %v280
    %v474 = vpop.f32.mrb[0].mxu0
    %v475 = vadd.f32 0.0, %v474
    %v476 = vpop.f32.mrb[0].mxu0
    %v477 = vpop.f32.mrb[0].mxu0
    %v478 = vadd.f32 0.0, %v477
    %v479 = vpop.f32.mrb[0].mxu0
    %480 = vmatprep.mubr.bf16.mxu0 %v283
    %481 = vmatmul.mubr.bf16.gmra.mrb[0].mxu0 %v282
    %v482 = vpop.f32.mrb[0].mxu0
    %v483 = vadd.f32 0.0, %v482
    %v484 = vpop.f32.mrb[0].mxu0
    %v485 = vpop.f32.mrb[0].mxu0
    %v486 = vadd.f32 0.0, %v485
    %v487 = vpop.f32.mrb[0].mxu0
    %488 = vmatprep.mubr.bf16.mxu0 %v285
    %489 = vmatmul.mubr.bf16.gmra.mrb[0].mxu0 %v284
    %v490 = vpop.f32.mrb[0].mxu0
    %v491 = vadd.f32 0.0, %v490
    %v492 = vpop.f32.mrb[0].mxu0
    %v493 = vpop.f32.mrb[0].mxu0
    %v494 = vadd.f32 0.0, %v493
    %v495 = vpop.f32.mrb[0].mxu0
    %496 = vmatprep.mubr.bf16.mxu0 %v287
    %497 = vmatmul.mubr.bf16.gmra.mrb[0].mxu0 %v286
    %v498 = vpop.f32.mrb[0].mxu0
    %v499 = vadd.f32 0.0, %v498
    %v500 = vpop.f32.mrb[0].mxu0
    %v501 = vpop.f32.mrb[0].mxu0
    %v502 = vadd.f32 0.0, %v501
    %v503 = vpop.f32.mrb[0].mxu0
    %504 = vmatprep.mubr.bf16.mxu0 %v289
    %505 = vmatmul.mubr.bf16.gmra.mrb[0].mxu0 %v288
    %v506 = vpop.f32.mrb[0].mxu0
    %v507 = vadd.f32 0.0, %v506
    %v508 = vpop.f32.mrb[0].mxu0
    %v509 = vpop.f32.mrb[0].mxu0
    %v510 = vadd.f32 0.0, %v509
    %v511 = vpop.f32.mrb[0].mxu0
    %512 = vmatprep.mubr.bf16.mxu0 %v291
    %513 = vmatmul.mubr.bf16.gmra.mrb[0].mxu0 %v290
    %v514 = vpop.f32.mrb[0].mxu0
    %v515 = vadd.f32 0.0, %v514
    %v516 = vpop.f32.mrb[0].mxu0
    %v517 = vpop.f32.mrb[0].mxu0
    %v518 = vadd.f32 0.0, %v517
    %v519 = vpop.f32.mrb[0].mxu0
    %520 = vmatprep.mubr.bf16.mxu0 %v293
    %521 = vmatmul.mubr.bf16.gmra.mrb[0].mxu0 %v292
    %v522 = vpop.f32.mrb[0].mxu0
    %v523 = vadd.f32 0.0, %v522
    %v524 = vpop.f32.mrb[0].mxu0
    %v525 = vpop.f32.mrb[0].mxu0
    %v526 = vadd.f32 0.0, %v525
    %v527 = vpop.f32.mrb[0].mxu0
    %528 = vmatprep.mubr.bf16.mxu0 %v295
    %529 = vmatmul.mubr.bf16.gmra.mrb[0].mxu0 %v294
    %v530 = vpop.f32.mrb[0].mxu0
    %v531 = vadd.f32 0.0, %v530
    %v532 = vpop.f32.mrb[0].mxu0
    %v533 = vpop.f32.mrb[0].mxu0
    %v534 = vadd.f32 0.0, %v533
    %v535 = vpop.f32.mrb[0].mxu0
    %536 = vmatprep.mubr.bf16.mxu0 %v297
    %537 = vmatmul.mubr.bf16.gmra.mrb[0].mxu0 %v296
    %v538 = vpop.f32.mrb[0].mxu0
    %v539 = vadd.f32 0.0, %v538
    %v540 = vpop.f32.mrb[0].mxu0
    %v541 = vpop.f32.mrb[0].mxu0
    %v542 = vadd.f32 0.0, %v541
    %v543 = vpop.f32.mrb[0].mxu0
    %544 = vmatprep.mubr.bf16.mxu0 %v299
    %545 = vmatmul.mubr.bf16.gmra.mrb[0].mxu0 %v298
    %v546 = vpop.f32.mrb[0].mxu0
    %v547 = vadd.f32 0.0, %v546
    %v548 = vpop.f32.mrb[0].mxu0
    %v549 = vpop.f32.mrb[0].mxu0
    %v550 = vadd.f32 0.0, %v549
    %v551 = vpop.f32.mrb[0].mxu0
    %552 = vmatprep.mubr.bf16.mxu0 %v301
    %553 = vmatmul.mubr.bf16.gmra.mrb[0].mxu0 %v300
    %v554 = vpop.f32.mrb[0].mxu0
    %v555 = vadd.f32 0.0, %v554
    %v556 = vpop.f32.mrb[0].mxu0
    %v557 = vpop.f32.mrb[0].mxu0
    %v558 = vadd.f32 0.0, %v557
    %v559 = vpop.f32.mrb[0].mxu0
    %560 = vmatprep.mubr.bf16.mxu0 %v303
    %561 = vmatmul.mubr.bf16.gmra.mrb[0].mxu0 %v302
    %v562 = vpop.f32.mrb[0].mxu0
    %v563 = vadd.f32 0.0, %v562
    %v564 = vpop.f32.mrb[0].mxu0
    %v565 = vpop.f32.mrb[0].mxu0
    %v566 = vadd.f32 0.0, %v565
    %v567 = vpop.f32.mrb[0].mxu0
    %568 = vmatprep.mubr.bf16.mxu0 %v305
    %569 = vmatmul.mubr.bf16.gmra.mrb[0].mxu0 %v304
    %v570 = vpop.f32.mrb[0].mxu0
    %v571 = vadd.f32 0.0, %v570
    %v572 = vpop.f32.mrb[0].mxu0
    %v573 = vpop.f32.mrb[0].mxu0
    %v574 = vadd.f32 0.0, %v573
    %v575 = vpop.f32.mrb[0].mxu0
    %576 = vmatprep.mubr.bf16.mxu0 %v307
    %577 = vmatmul.mubr.bf16.gmra.mrb[0].mxu0 %v306
    %v578 = vpop.f32.mrb[0].mxu0
    %v579 = vadd.f32 0.0, %v578
    %v580 = vpop.f32.mrb[0].mxu0
    %v581 = vpop.f32.mrb[0].mxu0
    %v582 = vadd.f32 0.0, %v581
    %v583 = vpop.f32.mrb[0].mxu0
    %584 = vmatprep.mubr.bf16.mxu0 %v309
    %585 = vmatmul.mubr.bf16.gmra.mrb[0].mxu0 %v308
    %v586 = vpop.f32.mrb[0].mxu0
    %v587 = vadd.f32 0.0, %v586
    %v588 = vpop.f32.mrb[0].mxu0
    %v589 = vpop.f32.mrb[0].mxu0
    %v590 = vadd.f32 0.0, %v589
    %v591 = vpop.f32.mrb[0].mxu0
    %592 = vmatprep.mubr.bf16.mxu0 %v311
    %593 = vmatmul.mubr.bf16.gmra.mrb[0].mxu0 %v310
    %v594 = vpop.f32.mrb[0].mxu0
    %v595 = vadd.f32 0.0, %v594
    %v596 = vpop.f32.mrb[0].mxu0
    %v597 = vpop.f32.mrb[0].mxu0
    %v598 = vadd.f32 0.0, %v597
    %v599 = vpop.f32.mrb[0].mxu0
    %600 = vdwg.mxu0
    %v601 = vpack.c.bf16 %v478, %v475
    %v602 = vpack.c.bf16 %v486, %v483
    %v603 = vpack.c.bf16 %v494, %v491
    %v604 = vpack.c.bf16 %v502, %v499
    %v605 = vpack.c.bf16 %v510, %v507
    %v606 = vpack.c.bf16 %v518, %v515
    %v607 = vpack.c.bf16 %v526, %v523
    %v608 = vpack.c.bf16 %v534, %v531
    %v609 = vpack.c.bf16 %v542, %v539
    %v610 = vpack.c.bf16 %v550, %v547
    %v611 = vpack.c.bf16 %v558, %v555
    %v612 = vpack.c.bf16 %v566, %v563
    %v613 = vpack.c.bf16 %v574, %v571
    %v614 = vpack.c.bf16 %v582, %v579
    %v615 = vpack.c.bf16 %v590, %v587
    %v616 = vpack.c.bf16 %v598, %v595
    %v617 = vld [vmem:[#allocation14] sm:$0xf]
    %v618 = vld [vmem:[#allocation14 + $0x4] sm:$0xf]
    %v619 = vld [vmem:[#allocation14 + $0x8] sm:$0xf]
    %v620 = vld [vmem:[#allocation14 + $0xc] sm:$0xf]
    %v621 = vld [vmem:[#allocation15] sm:$0x1]
    %v623 = vlaneseq
    %v624 = vshrl.u32 %v623, 7
    %v625 = vsub.s32 0, %v624
    %v626 = vrot.slane %v621, %v625
    %v632 = vunpack.c.l.b16 %v617
    %v633 = vunpack.c.l.b16 %v618
    %v634 = vunpack.c.l.b16 %v619
    %v635 = vunpack.c.l.b16 %v620
    %v636 = vpack.c.b16 %v633, %v632
    %v637 = vpack.c.b16 %v635, %v634
    %vm640 = vcmask 261120
    %v642 = vsel %vm640, %v601, 0
    %v645 = vsel %vm640, %v602, 0
    %v648 = vsel %vm640, %v603, 0
    %v651 = vsel %vm640, %v604, 0
    %v654 = vsel %vm640, %v605, 0
    %v657 = vsel %vm640, %v606, 0
    %v660 = vsel %vm640, %v607, 0
    %v663 = vsel %vm640, %v608, 0
    %v666 = vsel %vm640, %v609, 0
    %v669 = vsel %vm640, %v610, 0
    %v672 = vsel %vm640, %v611, 0
    %v675 = vsel %vm640, %v612, 0
    %v678 = vsel %vm640, %v613, 0
    %v681 = vsel %vm640, %v614, 0
    %v684 = vsel %vm640, %v615, 0
    %v687 = vsel %vm640, %v616, 0
    %689 = vmatprep.subr.bf16.mxu0 0
    %690 = vmatpush1.bf16.msra.mxu0 %v636
    %691 = vmatprep.subr.bf16.mxu0 0
    %692 = vmatpush1.bf16.msra.mxu0 %v637
    %693 = vmatprep.subr.bf16.mxu0 0
    %694 = vmatpush1.bf16.msra.mxu0 0
    %695 = vmatprep.subr.bf16.mxu0 0
    %696 = vmatpush1.bf16.msra.mxu0 0
    %697 = vmatprep.subr.bf16.mxu0 0
    %698 = vmatpush1.bf16.msra.mxu0 0
    %699 = vmatprep.subr.bf16.mxu0 0
    %700 = vmatpush1.bf16.msra.mxu0 0
    %701 = vmatprep.subr.bf16.mxu0 0
    %702 = vmatpush1.bf16.msra.mxu0 0
    %703 = vmatprep.subr.bf16.mxu0 0
    %704 = vmatpush1.bf16.msra.mxu0 0
    %705 = vmatprep.subr.bf16.mxu0 0
    %706 = vmatpush1.bf16.msra.mxu0 0
    %707 = vmatprep.subr.bf16.mxu0 0
    %708 = vmatpush1.bf16.msra.mxu0 0
    %709 = vmatprep.subr.bf16.mxu0 0
    %710 = vmatpush1.bf16.msra.mxu0 0
    %711 = vmatprep.subr.bf16.mxu0 0
    %712 = vmatpush1.bf16.msra.mxu0 0
    %713 = vmatprep.subr.bf16.mxu0 0
    %714 = vmatpush1.bf16.msra.mxu0 0
    %715 = vmatprep.subr.bf16.mxu0 0
    %716 = vmatpush1.bf16.msra.mxu0 0
    %717 = vmatprep.subr.bf16.mxu0 0
    %718 = vmatpush1.bf16.msra.mxu0 0
    %719 = vmatprep.subr.bf16.mxu0 0
    %720 = vmatpush1.bf16.msra.mxu0 0
    %721 = vmatprep.mubr.bf16.mxu0 0
    %722 = vmatmul.mubr.bf16.gmra.mrb[0].mxu0 %v642
    %v723 = vpop.f32.mrb[0].mxu0
    %v724 = vadd.f32 %v626, %v723
    %v725 = vpop.f32.mrb[0].mxu0
    %v726 = vpop.f32.mrb[0].mxu0
    %v727 = vadd.f32 %v626, %v726
    %v728 = vpop.f32.mrb[0].mxu0
    %729 = vmatprep.mubr.bf16.mxu0 0
    %730 = vmatmul.mubr.bf16.gmra.mrb[0].mxu0 %v645
    %v731 = vpop.f32.mrb[0].mxu0
    %v732 = vadd.f32 %v626, %v731
    %v733 = vpop.f32.mrb[0].mxu0
    %v734 = vpop.f32.mrb[0].mxu0
    %v735 = vadd.f32 %v626, %v734
    %v736 = vpop.f32.mrb[0].mxu0
    %737 = vmatprep.mubr.bf16.mxu0 0
    %738 = vmatmul.mubr.bf16.gmra.mrb[0].mxu0 %v648
    %v739 = vpop.f32.mrb[0].mxu0
    %v740 = vadd.f32 %v626, %v739
    %v741 = vpop.f32.mrb[0].mxu0
    %v742 = vpop.f32.mrb[0].mxu0
    %v743 = vadd.f32 %v626, %v742
    %v744 = vpop.f32.mrb[0].mxu0
    %745 = vmatprep.mubr.bf16.mxu0 0
    %746 = vmatmul.mubr.bf16.gmra.mrb[0].mxu0 %v651
    %v747 = vpop.f32.mrb[0].mxu0
    %v748 = vadd.f32 %v626, %v747
    %v749 = vpop.f32.mrb[0].mxu0
    %v750 = vpop.f32.mrb[0].mxu0
    %v751 = vadd.f32 %v626, %v750
    %v752 = vpop.f32.mrb[0].mxu0
    %753 = vmatprep.mubr.bf16.mxu0 0
    %754 = vmatmul.mubr.bf16.gmra.mrb[0].mxu0 %v654
    %v755 = vpop.f32.mrb[0].mxu0
    %v756 = vadd.f32 %v626, %v755
    %v757 = vpop.f32.mrb[0].mxu0
    %v758 = vpop.f32.mrb[0].mxu0
    %v759 = vadd.f32 %v626, %v758
    %v760 = vpop.f32.mrb[0].mxu0
    %761 = vmatprep.mubr.bf16.mxu0 0
    %762 = vmatmul.mubr.bf16.gmra.mrb[0].mxu0 %v657
    %v763 = vpop.f32.mrb[0].mxu0
    %v764 = vadd.f32 %v626, %v763
    %v765 = vpop.f32.mrb[0].mxu0
    %v766 = vpop.f32.mrb[0].mxu0
    %v767 = vadd.f32 %v626, %v766
    %v768 = vpop.f32.mrb[0].mxu0
    %769 = vmatprep.mubr.bf16.mxu0 0
    %770 = vmatmul.mubr.bf16.gmra.mrb[0].mxu0 %v660
    %v771 = vpop.f32.mrb[0].mxu0
    %v772 = vadd.f32 %v626, %v771
    %v773 = vpop.f32.mrb[0].mxu0
    %v774 = vpop.f32.mrb[0].mxu0
    %v775 = vadd.f32 %v626, %v774
    %v776 = vpop.f32.mrb[0].mxu0
    %777 = vmatprep.mubr.bf16.mxu0 0
    %778 = vmatmul.mubr.bf16.gmra.mrb[0].mxu0 %v663
    %v779 = vpop.f32.mrb[0].mxu0
    %v780 = vadd.f32 %v626, %v779
    %v781 = vpop.f32.mrb[0].mxu0
    %v782 = vpop.f32.mrb[0].mxu0
    %v783 = vadd.f32 %v626, %v782
    %v784 = vpop.f32.mrb[0].mxu0
    %785 = vmatprep.mubr.bf16.mxu0 0
    %786 = vmatmul.mubr.bf16.gmra.mrb[0].mxu0 %v666
    %v787 = vpop.f32.mrb[0].mxu0
    %v788 = vadd.f32 %v626, %v787
    %v789 = vpop.f32.mrb[0].mxu0
    %v790 = vpop.f32.mrb[0].mxu0
    %v791 = vadd.f32 %v626, %v790
    %v792 = vpop.f32.mrb[0].mxu0
    %793 = vmatprep.mubr.bf16.mxu0 0
    %794 = vmatmul.mubr.bf16.gmra.mrb[0].mxu0 %v669
    %v795 = vpop.f32.mrb[0].mxu0
    %v796 = vadd.f32 %v626, %v795
    %v797 = vpop.f32.mrb[0].mxu0
    %v798 = vpop.f32.mrb[0].mxu0
    %v799 = vadd.f32 %v626, %v798
    %v800 = vpop.f32.mrb[0].mxu0
    %801 = vmatprep.mubr.bf16.mxu0 0
    %802 = vmatmul.mubr.bf16.gmra.mrb[0].mxu0 %v672
    %v803 = vpop.f32.mrb[0].mxu0
    %v804 = vadd.f32 %v626, %v803
    %v805 = vpop.f32.mrb[0].mxu0
    %v806 = vpop.f32.mrb[0].mxu0
    %v807 = vadd.f32 %v626, %v806
    %v808 = vpop.f32.mrb[0].mxu0
    %809 = vmatprep.mubr.bf16.mxu0 0
    %810 = vmatmul.mubr.bf16.gmra.mrb[0].mxu0 %v675
    %v811 = vpop.f32.mrb[0].mxu0
    %v812 = vadd.f32 %v626, %v811
    %v813 = vpop.f32.mrb[0].mxu0
    %v814 = vpop.f32.mrb[0].mxu0
    %v815 = vadd.f32 %v626, %v814
    %v816 = vpop.f32.mrb[0].mxu0
    %817 = vmatprep.mubr.bf16.mxu0 0
    %818 = vmatmul.mubr.bf16.gmra.mrb[0].mxu0 %v678
    %v819 = vpop.f32.mrb[0].mxu0
    %v820 = vadd.f32 %v626, %v819
    %v821 = vpop.f32.mrb[0].mxu0
    %v822 = vpop.f32.mrb[0].mxu0
    %v823 = vadd.f32 %v626, %v822
    %v824 = vpop.f32.mrb[0].mxu0
    %825 = vmatprep.mubr.bf16.mxu0 0
    %826 = vmatmul.mubr.bf16.gmra.mrb[0].mxu0 %v681
    %v827 = vpop.f32.mrb[0].mxu0
    %v828 = vadd.f32 %v626, %v827
    %v829 = vpop.f32.mrb[0].mxu0
    %v830 = vpop.f32.mrb[0].mxu0
    %v831 = vadd.f32 %v626, %v830
    %v832 = vpop.f32.mrb[0].mxu0
    %833 = vmatprep.mubr.bf16.mxu0 0
    %834 = vmatmul.mubr.bf16.gmra.mrb[0].mxu0 %v684
    %v835 = vpop.f32.mrb[0].mxu0
    %v836 = vadd.f32 %v626, %v835
    %v837 = vpop.f32.mrb[0].mxu0
    %v838 = vpop.f32.mrb[0].mxu0
    %v839 = vadd.f32 %v626, %v838
    %v840 = vpop.f32.mrb[0].mxu0
    %841 = vmatprep.mubr.bf16.mxu0 0
    %842 = vmatmul.mubr.bf16.gmra.mrb[0].mxu0 %v687
    %v843 = vpop.f32.mrb[0].mxu0
    %v844 = vadd.f32 %v626, %v843
    %v845 = vpop.f32.mrb[0].mxu0
    %v846 = vpop.f32.mrb[0].mxu0
    %v847 = vadd.f32 %v626, %v846
    %v848 = vpop.f32.mrb[0].mxu0
    %849 = vdwg.mxu0
    %850 = vst [vmem:[#allocation12] sm:$0xff] %v724
    %851 = vst [vmem:[#allocation12 + $0x8] sm:$0xff] %v727
    %852 = vst [vmem:[#allocation12 + $0x10] sm:$0xff] %v732
    %853 = vst [vmem:[#allocation12 + $0x18] sm:$0xff] %v735
    %854 = vst [vmem:[#allocation12 + $0x20] sm:$0xff] %v740
    %855 = vst [vmem:[#allocation12 + $0x28] sm:$0xff] %v743
    %856 = vst [vmem:[#allocation12 + $0x30] sm:$0xff] %v748
    %857 = vst [vmem:[#allocation12 + $0x38] sm:$0xff] %v751
    %858 = vst [vmem:[#allocation12 + $0x40] sm:$0xff] %v756
    %859 = vst [vmem:[#allocation12 + $0x48] sm:$0xff] %v759
    %860 = vst [vmem:[#allocation12 + $0x50] sm:$0xff] %v764
    %861 = vst [vmem:[#allocation12 + $0x58] sm:$0xff] %v767
    %862 = vst [vmem:[#allocation12 + $0x60] sm:$0xff] %v772
    %863 = vst [vmem:[#allocation12 + $0x68] sm:$0xff] %v775
    %864 = vst [vmem:[#allocation12 + $0x70] sm:$0xff] %v780
    %865 = vst [vmem:[#allocation12 + $0x78] sm:$0xff] %v783
    %866 = vst [vmem:[#allocation12 + $0x80] sm:$0xff] %v788
    %867 = vst [vmem:[#allocation12 + $0x88] sm:$0xff] %v791
    %868 = vst [vmem:[#allocation12 + $0x90] sm:$0xff] %v796
    %869 = vst [vmem:[#allocation12 + $0x98] sm:$0xff] %v799
    %870 = vst [vmem:[#allocation12 + $0xa0] sm:$0xff] %v804
    %871 = vst [vmem:[#allocation12 + $0xa8] sm:$0xff] %v807
    %872 = vst [vmem:[#allocation12 + $0xb0] sm:$0xff] %v812
    %873 = vst [vmem:[#allocation12 + $0xb8] sm:$0xff] %v815
    %874 = vst [vmem:[#allocation12 + $0xc0] sm:$0xff] %v820
    %875 = vst [vmem:[#allocation12 + $0xc8] sm:$0xff] %v823
    %876 = vst [vmem:[#allocation12 + $0xd0] sm:$0xff] %v828
    %877 = vst [vmem:[#allocation12 + $0xd8] sm:$0xff] %v831
    %878 = vst [vmem:[#allocation12 + $0xe0] sm:$0xff] %v836
    %879 = vst [vmem:[#allocation12 + $0xe8] sm:$0xff] %v839
    %880 = vst [vmem:[#allocation12 + $0xf0] sm:$0xff] %v844
    %881 = vst [vmem:[#allocation12 + $0xf8] sm:$0xff] %v847
    // Predicated region
    $region18: #{simple_gcn_net_forward.2} parent=1 // pred_check
      _
    $region19: #{simple_gcn_net_forward.2} parent=1 // pred_check_branch
      %883 = sbr.rel (0) target = $region21
    $region20: #{simple_gcn_net_forward.2} parent=1 // pred_region
      %s885 = ssub.s32 4096, 4096
      %886 = vsyncadd [#allocation13], %s885
      %s887 = sshll.u32 [#allocation12], 4
      %s888 = int_to_ptr.vmem [resolvable:$true] %s887
      %893 = dma.vmem_to_hbm [thread:$0]  %s888, 4096, %s6, [#allocation13], 128, 128, 8
    $region21: #{simple_gcn_net_forward.2} parent=1 // pred_fallthru
      _
    // Predicated region
    $region22: #{simple_gcn_net_forward.2} parent=1 // pred_check
      _
    $region23: #{simple_gcn_net_forward.2} parent=1 // pred_check_branch
      %895 = sbr.rel (0) target = $region25
    $region24: #{simple_gcn_net_forward.2} parent=1 // pred_region
      %896 = dma.done [#allocation13], 4096
    $region25: #{simple_gcn_net_forward.2} parent=1 // pred_fallthru
      _
    %897 = vsyncpa [#allocation13], 1

</llo_original>
